<compile_context>
chip_gen: v5e
topology: v5e:2x2
jax: 0.10.0
libtpu: 0.0.40
codegen_flags: <defaults>
</compile_context>

<pallas_src>
import jax
import jax.numpy as jnp
from jax.experimental import pallas as pl
from jax.experimental.pallas import tpu as pltpu


def _round_up(a: int, m: int) -> int:
    return (a + m - 1) // m * m


def _layer_norm_rows(z, g_ref, b_ref, d_model, eps, out_dtype):
    """Annotated-transformer LayerNormalization: (z - mu) / (unbiased std + eps) * g + b."""
    mu = jnp.mean(z, axis=-1, keepdims=True)
    diff = z - mu
    var_unbiased = jnp.sum(diff * diff, axis=-1, keepdims=True) * (1.0 / (d_model - 1))
    inv = pl.reciprocal(jnp.sqrt(var_unbiased) + eps, approx=False)
    return (diff * inv * g_ref[...].astype(jnp.float32)
            + b_ref[...].astype(jnp.float32)).astype(out_dtype)


def make_resident_kernel(d_model: int, eps: float):
    """num_k == 1: W1/W2 stay resident in VMEM across all row tiles; no accumulator RMW."""
    def kernel(x_ref, w1_ref, b1_ref, w2_ref, b2_ref, g_ref, bta_ref, o_ref):
        x = x_ref[...]                                                      # (tm, d_model)
        h = jnp.dot(x, w1_ref[...], preferred_element_type=jnp.float32)     # (tm, d_hidden)
        h = jnp.maximum(h + b1_ref[...].astype(jnp.float32), 0.0)           # ReLU
        z = jnp.dot(h.astype(w2_ref.dtype), w2_ref[...],
                    preferred_element_type=jnp.float32)                     # (tm, d_model)
        # dropout is identity in eval mode.  # TODO(synk): train-mode dropout omitted.
        z = z + b2_ref[...].astype(jnp.float32) + x.astype(jnp.float32)     # bias2 + residual
        o_ref[...] = _layer_norm_rows(z, g_ref, bta_ref, d_model, eps, o_ref.dtype)
    return kernel


def make_ktiled_kernel(d_model: int, eps: float):
    """d_hidden tiled on an 'arbitrary' grid axis with an f32 VMEM accumulator."""
    def kernel(x_ref, w1_ref, b1_ref, w2_ref, b2_ref, g_ref, bta_ref, o_ref, acc_ref):
        k = pl.program_id(1)

        @pl.when(k == 0)
        def _init():
            # Fold bias2 + residual into the accumulator init -> finalize is pure LN.
            acc_ref[...] = (b2_ref[...].astype(jnp.float32)
                            + x_ref[...].astype(jnp.float32))

        h = jnp.dot(x_ref[...], w1_ref[...], preferred_element_type=jnp.float32)  # (tm, tk)
        h = jnp.maximum(h + b1_ref[...].astype(jnp.float32), 0.0)
        acc_ref[...] += jnp.dot(h.astype(w2_ref.dtype), w2_ref[...],
                                preferred_element_type=jnp.float32)

        @pl.when(k == pl.num_programs(1) - 1)
        def _finalize():
            o_ref[...] = _layer_norm_rows(acc_ref[...], g_ref, bta_ref,
                                          d_model, eps, o_ref.dtype)
    return kernel


def _vmem_budget():
    """(per-core VMEM capacity, tile-selection budget ~= 80% of it)."""
    try:
        cap = int(getattr(pltpu.get_tpu_info(), "vmem_capacity_bytes", 64 << 20))
    except Exception:
        cap = 64 << 20
    cap = max(cap, 32 << 20)
    # ~51 MiB on v7x (64 MiB/TC, leave headroom), ~102 MiB on v5e/v6e (128 MiB).
    budget = min(int(cap * 0.80), 112 << 20)
    return cap, budget


def _select_tiles(N, d_model, d_hidden, isz_in, isz_w, isz_out, budget, pack):
    """Return (tm, tk, num_k). num_k == 1 means resident weights (tk == d_hidden)."""
    n_pack = _round_up(max(N, 1), pack)
    # Keep >=2 row-grid steps when possible: the "parallel" row axis is what shards
    # across the two TensorCores on v7x; one fat tile would leave a TC idle.
    if n_pack >= 2 * pack:
        tm_cap = _round_up((n_pack + 1) // 2, pack)
    else:
        tm_cap = n_pack

    cands = sorted({t for t in (1024, 768, 512, 384, 256, 128, 64, 32, 16, 8)
                    if t % pack == 0 and t <= tm_cap} | {tm_cap}, reverse=True)
    # Prefer row tiles with <=12.5% padding waste (largest first), then the rest.
    low_waste = [t for t in cands if _round_up(n_pack, t) - n_pack <= n_pack // 8]
    tm_order = low_waste + [t for t in cands if t not in low_waste]

    def footprint(tm, tk, resident):
        f = 2 * tm * d_model * isz_in + 2 * tm * d_model * isz_out  # x / out (double-buffered)
        f += 4 * d_model * tk * isz_w                               # W1 + W2 tiles (double-buffered)
        f += 2 * tk * 4 + 6 * d_model * 4                           # b1 / b2 / gamma / beta
        f += tm * tk * 4                                            # hidden activation (f32)
        if not resident:
            f += tm * d_model * 4                                   # f32 accumulator scratch
        return int(f * 1.15)                                        # Mosaic-internal headroom

    # 1) Resident weights: each weight matrix is DMA'd exactly once for the whole call.
    for tm in tm_order:
        if tm < min(128, tm_cap):          # residency not worth a degenerate MXU M dim
            continue
        if footprint(tm, d_hidden, resident=True) <= budget:
            return tm, d_hidden, 1

    # 2) Stream d_hidden in k-tiles (multiples of 128; d_hidden zero-padded if needed).
    for tm in tm_order:
        for tk in (1024, 512, 256, 128):
            if tk >= d_hidden:
                continue
            if footprint(tm, tk, resident=False) <= budget:
                return tm, tk, _round_up(d_hidden, tk) // tk

    # 3) Last resort: smallest tiles (may exceed the budget; let Mosaic schedule it).
    tm = tm_order[-1] if tm_order else pack
    if d_hidden <= 128:
        return tm, d_hidden, 1
    return tm, 128, _round_up(d_hidden, 128) // 128


def positionwise_ffn(x, w1, b1, w2, b2, gamma, beta, *, eps=1e-3,
                     matmul_dtype=None, vmem_budget_bytes=None):
    """x: (B, L, d_model). w1: (d_model, d_hidden), w2: (d_hidden, d_model).

    matmul_dtype: optionally cast the MXU operands (x, W1, W2), e.g. jnp.bfloat16 on
    v6e/v7x; accumulation, biases, residual and LayerNorm stay f32.
    vmem_budget_bytes: override the per-chip tile-selection budget (testing).
    """
    B, L, d_model = x.shape
    d_hidden = w1.shape[1]
    N = B * L
    out_dtype = x.dtype

    x2d = x.reshape(N, d_model)
    if matmul_dtype is not None:
        x2d = x2d.astype(matmul_dtype)
        w1 = w1.astype(matmul_dtype)
        w2 = w2.astype(matmul_dtype)

    isz_in = jnp.dtype(x2d.dtype).itemsize
    isz_w = jnp.dtype(w1.dtype).itemsize
    isz_out = jnp.dtype(out_dtype).itemsize

    vmem_cap, budget = _vmem_budget()
    if vmem_budget_bytes is not None:
        budget = int(vmem_budget_bytes)

    # Sublane pack of the narrowest row-axis operand: 8 for f32, 16 for bf16, 32 for int8.
    pack = max(8, 32 // min(isz_in, isz_out))

    tm, tk, num_k = _select_tiles(N, d_model, d_hidden, isz_in, isz_w, isz_out,
                                  budget, pack)

    # Row padding only when needed (jnp.pad / output slice are an extra HBM pass each).
    n_pad = _round_up(N, tm)
    if n_pad != N:
        x2d = jnp.pad(x2d, ((0, n_pad - N), (0, 0)))
    n_rows = n_pad // tm

    # Zero-pad d_hidden up to a multiple of tk when k-tiling (exact: relu(0) = 0 through
    # zero W2 rows contributes nothing).
    dh_pad = _round_up(d_hidden, tk) if num_k > 1 else d_hidden
    if dh_pad != d_hidden:
        w1 = jnp.pad(w1, ((0, 0), (0, dh_pad - d_hidden)))
        b1 = jnp.pad(b1, ((0, dh_pad - d_hidden),))
        w2 = jnp.pad(w2, ((0, dh_pad - d_hidden), (0, 0)))

    b1_2d = b1.reshape(1, dh_pad).astype(jnp.float32)
    b2_2d = b2.reshape(1, d_model).astype(jnp.float32)
    g_2d = gamma.reshape(1, d_model).astype(jnp.float32)
    bta_2d = beta.reshape(1, d_model).astype(jnp.float32)

    # Never clamp the limit below what the tiles need (tiles were chosen to fit `budget`);
    # never exceed physical per-core VMEM.
    vmem_limit = int(min(max(budget, 32 << 20), vmem_cap))

    if num_k == 1:
        kernel = make_resident_kernel(d_model, eps)
        out2d = pl.pallas_call(
            kernel,
            out_shape=jax.ShapeDtypeStruct((n_pad, d_model), out_dtype),
            grid_spec=pltpu.PrefetchScalarGridSpec(
                num_scalar_prefetch=0,
                grid=(n_rows,),
                in_specs=[
                    pl.BlockSpec((tm, d_model), lambda i: (i, 0)),       # x rows
                    pl.BlockSpec((d_model, dh_pad), lambda i: (0, 0)),   # W1 (resident)
                    pl.BlockSpec((1, dh_pad), lambda i: (0, 0)),         # b1
                    pl.BlockSpec((dh_pad, d_model), lambda i: (0, 0)),   # W2 (resident)
                    pl.BlockSpec((1, d_model), lambda i: (0, 0)),        # b2
                    pl.BlockSpec((1, d_model), lambda i: (0, 0)),        # gamma
                    pl.BlockSpec((1, d_model), lambda i: (0, 0)),        # beta
                ],
                out_specs=pl.BlockSpec((tm, d_model), lambda i: (i, 0)),
            ),
            compiler_params=pltpu.CompilerParams(
                dimension_semantics=("parallel",),
                vmem_limit_bytes=vmem_limit,
            ),
        )(x2d, w1, b1_2d, w2, b2_2d, g_2d, bta_2d)
    else:
        kernel = make_ktiled_kernel(d_model, eps)
        out2d = pl.pallas_call(
            kernel,
            out_shape=jax.ShapeDtypeStruct((n_pad, d_model), out_dtype),
            grid_spec=pltpu.PrefetchScalarGridSpec(
                num_scalar_prefetch=0,
                grid=(n_rows, num_k),
                in_specs=[
                    pl.BlockSpec((tm, d_model), lambda i, k: (i, 0)),    # x rows
                    pl.BlockSpec((d_model, tk), lambda i, k: (0, k)),    # W1 k-tile
                    pl.BlockSpec((1, tk), lambda i, k: (0, k)),          # b1 k-tile
                    pl.BlockSpec((tk, d_model), lambda i, k: (k, 0)),    # W2 k-tile
                    pl.BlockSpec((1, d_model), lambda i, k: (0, 0)),     # b2
                    pl.BlockSpec((1, d_model), lambda i, k: (0, 0)),     # gamma
                    pl.BlockSpec((1, d_model), lambda i, k: (0, 0)),     # beta
                ],
                out_specs=pl.BlockSpec((tm, d_model), lambda i, k: (i, 0)),
                scratch_shapes=[pltpu.VMEM((tm, d_model), jnp.float32)],
            ),
            compiler_params=pltpu.CompilerParams(
                dimension_semantics=("parallel", "arbitrary"),
                vmem_limit_bytes=vmem_limit,
            ),
        )(x2d, w1, b1_2d, w2, b2_2d, g_2d, bta_2d)

    if n_pad != N:
        out2d = out2d[:N]
    return out2d.reshape(B, L, d_model)


if __name__ == "__main__":
    def _reference(x, w1, b1, w2, b2, gamma, beta, eps=1e-3):
        B, L, d_model = x.shape
        x2 = x.reshape(-1, d_model)
        h = jnp.maximum(x2 @ w1 + b1, 0.0)
        z = h @ w2 + b2 + x2
        mu = z.mean(-1, keepdims=True)
        sigma = jnp.sqrt(((z - mu) ** 2).sum(-1, keepdims=True) / (d_model - 1))
        return ((z - mu) / (sigma + eps) * gamma + beta).reshape(B, L, d_model)

    # ---- Test 1: small module-consistent shapes; resident-weight path, 2 row-grid steps.
    B, L, d_model, d_hidden = 2, 8, 32, 64
    kx, kw1, kb1, kw2, kb2 = jax.random.split(jax.random.PRNGKey(0), 5)
    x = jax.random.normal(kx, (B, L, d_model), dtype=jnp.float32)
    # Conv1d(d_model, d_hidden, 1).weight is (d_hidden, d_model, 1); the equivalent linear
    # weight is its (d_model, d_hidden) transpose.
    w1 = jax.random.normal(kw1, (d_model, d_hidden), dtype=jnp.float32) * 0.05
    b1 = jax.random.normal(kb1, (d_hidden,), dtype=jnp.float32) * 0.05
    w2 = jax.random.normal(kw2, (d_hidden, d_model), dtype=jnp.float32) * 0.05
    b2 = jax.random.normal(kb2, (d_model,), dtype=jnp.float32) * 0.05
    gamma = jnp.ones((d_model,), dtype=jnp.float32)
    beta = jnp.zeros((d_model,), dtype=jnp.float32)

    out = jax.block_until_ready(positionwise_ffn(x, w1, b1, w2, b2, gamma, beta))
    ref = _reference(x, w1, b1, w2, b2, gamma, beta)
    assert jnp.allclose(out, ref, atol=1e-4, rtol=1e-4), "resident path mismatch"

    # ---- Test 2: tiny forced VMEM budget exercises the k-tiled accumulator path and the
    # d_hidden zero-padding (320 -> 384 with tk=128).
    B2, L2, dm2, dh2 = 2, 8, 128, 320
    k2 = jax.random.split(jax.random.PRNGKey(1), 5)
    x2 = jax.random.normal(k2[0], (B2, L2, dm2), dtype=jnp.float32)
    w1b = jax.random.normal(k2[1], (dm2, dh2), dtype=jnp.float32) * 0.05
    b1b = jax.random.normal(k2[2], (dh2,), dtype=jnp.float32) * 0.05
    w2b = jax.random.normal(k2[3], (dh2, dm2), dtype=jnp.float32) * 0.05
    b2b = jax.random.normal(k2[4], (dm2,), dtype=jnp.float32) * 0.05
    g2 = jnp.ones((dm2,), dtype=jnp.float32)
    bt2 = jnp.zeros((dm2,), dtype=jnp.float32)

    out2 = jax.block_until_ready(
        positionwise_ffn(x2, w1b, b1b, w2b, b2b, g2, bt2, vmem_budget_bytes=512 * 1024))
    ref2 = _reference(x2, w1b, b1b, w2b, b2b, g2, bt2)
    assert jnp.allclose(out2, ref2, atol=1e-4, rtol=1e-4), "k-tiled path mismatch"

    print("KERNEL_OK")
</pallas_src>

<mosaic_0001>
module attributes {stable_mosaic.version = 11 : i64} {
  func.func @kernel(%arg0: i32, %arg1: memref<8x32xf32, #tpu.memory_space<vmem>>, %arg2: memref<32x64xf32, #tpu.memory_space<vmem>>, %arg3: memref<1x64xf32, #tpu.memory_space<vmem>>, %arg4: memref<64x32xf32, #tpu.memory_space<vmem>>, %arg5: memref<1x32xf32, #tpu.memory_space<vmem>>, %arg6: memref<1x32xf32, #tpu.memory_space<vmem>>, %arg7: memref<1x32xf32, #tpu.memory_space<vmem>>, %arg8: memref<8x32xf32, #tpu.memory_space<vmem>>) attributes {dimension_semantics = [#tpu.dimension_semantics<parallel>], iteration_bounds = array<i64: 2>, scalar_prefetch = 0 : i64, scratch_operands = 0 : i64, tpu.core_type = #tpu.core_type<tc>, window_params = [{transform_indices = @transform_0, window_bounds = array<i64: 8, 32>}, {pipeline_mode = #tpu.pipeline_mode<synchronous>, transform_indices = @transform_1, window_bounds = array<i64: 32, 64>}, {pipeline_mode = #tpu.pipeline_mode<synchronous>, transform_indices = @transform_2, window_bounds = array<i64: 1, 64>}, {pipeline_mode = #tpu.pipeline_mode<synchronous>, transform_indices = @transform_3, window_bounds = array<i64: 64, 32>}, {pipeline_mode = #tpu.pipeline_mode<synchronous>, transform_indices = @transform_4, window_bounds = array<i64: 1, 32>}, {pipeline_mode = #tpu.pipeline_mode<synchronous>, transform_indices = @transform_5, window_bounds = array<i64: 1, 32>}, {pipeline_mode = #tpu.pipeline_mode<synchronous>, transform_indices = @transform_6, window_bounds = array<i64: 1, 32>}, {transform_indices = @transform_7, window_bounds = array<i64: 8, 32>}]} {
    %c0 = arith.constant 0 : index
    %c0_0 = arith.constant 0 : index
    %0 = vector.load %arg1[%c0, %c0_0] : memref<8x32xf32, #tpu.memory_space<vmem>>, vector<8x32xf32>
    %c0_1 = arith.constant 0 : index
    %c0_2 = arith.constant 0 : index
    %1 = vector.load %arg2[%c0_1, %c0_2] : memref<32x64xf32, #tpu.memory_space<vmem>>, vector<32x64xf32>
    %cst = arith.constant dense<0.000000e+00> : vector<8x64xf32>
    %2 = tpu.matmul %0, %1, %cst {dimension_numbers = #tpu.dot_dimension_numbers<[1], [0], [0], [1], [0, 0, 1, 1], [], []>} : vector<8x32xf32>, vector<32x64xf32>, vector<8x64xf32> -> vector<8x64xf32>
    %c0_3 = arith.constant 0 : index
    %c0_4 = arith.constant 0 : index
    %3 = vector.load %arg3[%c0_3, %c0_4] : memref<1x64xf32, #tpu.memory_space<vmem>>, vector<1x64xf32>
    %4 = vector.broadcast %3 : vector<1x64xf32> to vector<8x64xf32>
    %5 = arith.addf %2, %4 : vector<8x64xf32>
    %cst_5 = arith.constant 0.000000e+00 : f32
    %6 = vector.broadcast %cst_5 : f32 to vector<8x64xf32>
    %7 = arith.maximumf %5, %6 : vector<8x64xf32>
    %c0_6 = arith.constant 0 : index
    %c0_7 = arith.constant 0 : index
    %8 = vector.load %arg4[%c0_6, %c0_7] : memref<64x32xf32, #tpu.memory_space<vmem>>, vector<64x32xf32>
    %cst_8 = arith.constant dense<0.000000e+00> : vector<8x32xf32>
    %9 = tpu.matmul %7, %8, %cst_8 {dimension_numbers = #tpu.dot_dimension_numbers<[1], [0], [0], [1], [0, 0, 1, 1], [], []>} : vector<8x64xf32>, vector<64x32xf32>, vector<8x32xf32> -> vector<8x32xf32>
    %c0_9 = arith.constant 0 : index
    %c0_10 = arith.constant 0 : index
    %10 = vector.load %arg5[%c0_9, %c0_10] : memref<1x32xf32, #tpu.memory_space<vmem>>, vector<1x32xf32>
    %11 = vector.broadcast %10 : vector<1x32xf32> to vector<8x32xf32>
    %12 = arith.addf %9, %11 : vector<8x32xf32>
    %13 = arith.addf %12, %0 : vector<8x32xf32>
    %cst_11 = arith.constant dense<0.000000e+00> : vector<8xf32>
    %14 = vector.multi_reduction <add>, %13, %cst_11 [1] : vector<8x32xf32> to vector<8xf32>
    %15 = vector.shape_cast %14 : vector<8xf32> to vector<8x1xf32>
    %cst_12 = arith.constant 3.200000e+01 : f32
    %16 = vector.broadcast %cst_12 : f32 to vector<8x1xf32>
    %17 = arith.divf %15, %16 : vector<8x1xf32>
    %18 = vector.broadcast %17 : vector<8x1xf32> to vector<8x32xf32>
    %19 = arith.subf %13, %18 : vector<8x32xf32>
    %20 = arith.mulf %19, %19 : vector<8x32xf32>
    %cst_13 = arith.constant dense<0.000000e+00> : vector<8xf32>
    %21 = vector.multi_reduction <add>, %20, %cst_13 [1] : vector<8x32xf32> to vector<8xf32>
    %22 = vector.shape_cast %21 : vector<8xf32> to vector<8x1xf32>
    %cst_14 = arith.constant 0.0322580636 : f32
    %23 = vector.broadcast %cst_14 : f32 to vector<8x1xf32>
    %24 = arith.mulf %22, %23 : vector<8x1xf32>
    %25 = math.sqrt %24 : vector<8x1xf32>
    %cst_15 = arith.constant 1.000000e-03 : f32
    %26 = vector.broadcast %cst_15 : f32 to vector<8x1xf32>
    %27 = arith.addf %25, %26 : vector<8x1xf32>
    %28 = tpu.reciprocal %27 : vector<8x1xf32> -> vector<8x1xf32>
    %29 = vector.broadcast %28 : vector<8x1xf32> to vector<8x32xf32>
    %30 = arith.mulf %19, %29 : vector<8x32xf32>
    %c0_16 = arith.constant 0 : index
    %c0_17 = arith.constant 0 : index
    %31 = vector.load %arg6[%c0_16, %c0_17] : memref<1x32xf32, #tpu.memory_space<vmem>>, vector<1x32xf32>
    %32 = vector.broadcast %31 : vector<1x32xf32> to vector<8x32xf32>
    %33 = arith.mulf %30, %32 : vector<8x32xf32>
    %c0_18 = arith.constant 0 : index
    %c0_19 = arith.constant 0 : index
    %34 = vector.load %arg7[%c0_18, %c0_19] : memref<1x32xf32, #tpu.memory_space<vmem>>, vector<1x32xf32>
    %35 = vector.broadcast %34 : vector<1x32xf32> to vector<8x32xf32>
    %36 = arith.addf %33, %35 : vector<8x32xf32>
    %c0_20 = arith.constant 0 : index
    %c0_21 = arith.constant 0 : index
    %37 = vector.load %arg8[%c0_20, %c0_21] : memref<8x32xf32, #tpu.memory_space<vmem>>, vector<8x32xf32>
    tpu.vector_store %arg8[%c0_20, %c0_21], %36 {strides = array<i32>} : memref<8x32xf32, #tpu.memory_space<vmem>>, vector<8x32xf32>,
    return
  }
  func.func @transform_0(%arg0: i32) -> (i32, i32) {
    %c0_i32 = arith.constant 0 : i32
    %c0_i32_0 = arith.constant 0 : i32
    return %arg0, %c0_i32 : i32, i32
  }
  func.func @transform_1(%arg0: i32) -> (i32, i32) {
    %c0_i32 = arith.constant 0 : i32
    %c0_i32_0 = arith.constant 0 : i32
    %c0_i32_1 = arith.constant 0 : i32
    return %c0_i32, %c0_i32_0 : i32, i32
  }
  func.func @transform_2(%arg0: i32) -> (i32, i32) {
    %c0_i32 = arith.constant 0 : i32
    %c0_i32_0 = arith.constant 0 : i32
    %c0_i32_1 = arith.constant 0 : i32
    return %c0_i32, %c0_i32_0 : i32, i32
  }
  func.func @transform_3(%arg0: i32) -> (i32, i32) {
    %c0_i32 = arith.constant 0 : i32
    %c0_i32_0 = arith.constant 0 : i32
    %c0_i32_1 = arith.constant 0 : i32
    return %c0_i32, %c0_i32_0 : i32, i32
  }
  func.func @transform_4(%arg0: i32) -> (i32, i32) {
    %c0_i32 = arith.constant 0 : i32
    %c0_i32_0 = arith.constant 0 : i32
    %c0_i32_1 = arith.constant 0 : i32
    return %c0_i32, %c0_i32_0 : i32, i32
  }
  func.func @transform_5(%arg0: i32) -> (i32, i32) {
    %c0_i32 = arith.constant 0 : i32
    %c0_i32_0 = arith.constant 0 : i32
    %c0_i32_1 = arith.constant 0 : i32
    return %c0_i32, %c0_i32_0 : i32, i32
  }
  func.func @transform_6(%arg0: i32) -> (i32, i32) {
    %c0_i32 = arith.constant 0 : i32
    %c0_i32_0 = arith.constant 0 : i32
    %c0_i32_1 = arith.constant 0 : i32
    return %c0_i32, %c0_i32_0 : i32, i32
  }
  func.func @transform_7(%arg0: i32) -> (i32, i32) {
    %c0_i32 = arith.constant 0 : i32
    %c0_i32_0 = arith.constant 0 : i32
    return %arg0, %c0_i32 : i32, i32
  }
}

</mosaic_0001>

<llo_original>
// kernel: tpu_custom_call.1
$region0: #{tpu_custom_call.1}
  #allocation0 [shape = 'u32[]', space=smem, size = 0x4, offset = 0x4, fixed_abs, tag = 'smem constant byte address 0x4 - core index']
  #allocation1 [shape = 'u32[72,128]{1,0:T(1,128)}', space=vmem, size = 0x9000, scoped, tag = 'internal scratch']
  %s0 = inlined_call_operand.vmem [shape: f32[16,32], index: 0, kind: input, shape index: {}]
  %s1 = inlined_call_operand.vmem [shape: f32[32,64], index: 1, kind: input, shape index: {}]
  %s2 = inlined_call_operand.vmem [shape: f32[1,64], index: 2, kind: input, shape index: {}]
  %s3 = inlined_call_operand.vmem [shape: f32[64,32], index: 3, kind: input, shape index: {}]
  %s4 = inlined_call_operand.vmem [shape: f32[1,32], index: 4, kind: input, shape index: {}]
  %s5 = inlined_call_operand.vmem [shape: f32[1,32], index: 5, kind: input, shape index: {}]
  %s6 = inlined_call_operand.vmem [shape: f32[1,32], index: 6, kind: input, shape index: {}]
  %s7 = inlined_call_operand.hbm [shape: f32[16,32], index: 7, kind: output, shape index: {}]
  %s8 = sld [smem:[#allocation0]]
  $region61: #{tpu_custom_call.1} parent=0
    _
  %s10 = ssub.s32 1, %s8
  %s11 = scalar_select 0, %s10, %s8
  $region1: #{tpu_custom_call.1} parent=0
    #allocation2 [shape = 'u8[8192]{0}', space=vmem, size = 0x2000, scoped, tag = 'output window, operand 0']
    #allocation3 [shape = 's32[2]{0}', space=sflag, size = 0x8, scoped, tag = 'scoped memory for tpu_custom_call.1']
    %12 = vsyncpa [#allocation3], 0
    %s13 = scalar_lea.sflag [#allocation3], 1
    %14 = vsyncpa %s13, 0
    loop: start=0, step=1, limit=4
    $region2: #{tpu_custom_call.1} parent=1 // loop_pre_header
      _
    $region3: #{tpu_custom_call.1} parent=1 // loop_header
      %s16 = sphi 0, %s20
      %p17 = scmp.ge.s32.totalorder %s16, 4
      %s26 = sphi 0, %s28
      %s29 = sphi 0, %s26
      %s30 = sphi 0, %s29
      %s46 = sphi 0, %s30
      %s50 = sphi 0, %s50
      %s52 = sphi 0, %s50
      %s53 = sphi 0, %s52
      %s67 = sphi 0, %s53
      %s71 = sphi 0, %s71
      %s73 = sphi 0, %s71
      %s74 = sphi 0, %s73
      %s88 = sphi 0, %s74
      %s92 = sphi 0, %s92
      %s94 = sphi 0, %s92
      %s95 = sphi 0, %s94
      %s109 = sphi 0, %s95
      %s113 = sphi 0, %s113
      %s115 = sphi 0, %s113
      %s116 = sphi 0, %s115
      %s130 = sphi 0, %s116
      %s134 = sphi 0, %s134
      %s136 = sphi 0, %s134
      %s137 = sphi 0, %s136
      %s151 = sphi 0, %s137
      %s155 = sphi 0, %s155
      %s157 = sphi 0, %s155
      %s158 = sphi 0, %s157
      %s172 = sphi 0, %s158
      %s178 = sphi 0, %s180
      %s181 = sphi 0, %s178
      %s182 = sphi 0, %s181
      %s198 = sphi 0, %s182
    $region4: #{tpu_custom_call.1} parent=1 // loop_header_branch
      %19 = sbr.rel (%p17) target = $region8
    $region5: #{tpu_custom_call.1} parent=1 // loop_body
      %s21 = ssub.s32 %s16, 1
      %s22 = ssub.s32 %s16, 2
      %s23 = sadd.s32 %s16, 1
      %s24 = ssub.s32 %s16, %s23
      %p25 = scmp.eq.s32.totalorder %s24, 0
      %s27 = sadd.s32 %s26, 1
      %s28 = scalar_select %p25, %s26, %s27
      %p31 = pneg %p25
      %p32 = scmp.eq.s32.totalorder %s16, 1
      %p33 = por %p31, %p32
      %p34 = scmp.ne.s32.totalorder %s26, %s29
      %p35 = scmp.eq.s32.totalorder %s16, 0
      %p36 = por %p34, %p35
      %p37 = scmp.ne.s32.totalorder %s26, %s29
      %p38 = scmp.eq.s32.totalorder %s21, 1
      %p39 = por %p37, %p38
      %p40 = scmp.ne.s32.totalorder %s29, %s30
      %p41 = scmp.eq.s32.totalorder %s21, 0
      %p42 = por %p40, %p41
      %p43 = scmp.ne.s32.totalorder %s29, %s30
      %p44 = scmp.eq.s32.totalorder %s22, 1
      %p45 = por %p43, %p44
      %p47 = scmp.ne.s32.totalorder %s30, %s46
      %p48 = scmp.eq.s32.totalorder %s22, 0
      %p49 = por %p47, %p48
      %s51 = sadd.s32 %s50, 1
      %p54 = scmp.eq.s32.totalorder %s16, 1
      %p55 = scmp.ne.s32.totalorder %s50, %s52
      %p56 = scmp.eq.s32.totalorder %s16, 0
      %p57 = por %p55, %p56
      %p58 = scmp.ne.s32.totalorder %s50, %s52
      %p59 = scmp.eq.s32.totalorder %s21, 1
      %p60 = por %p58, %p59
      %p61 = scmp.ne.s32.totalorder %s52, %s53
      %p62 = scmp.eq.s32.totalorder %s21, 0
      %p63 = por %p61, %p62
      %p64 = scmp.ne.s32.totalorder %s52, %s53
      %p65 = scmp.eq.s32.totalorder %s22, 1
      %p66 = por %p64, %p65
      %p68 = scmp.ne.s32.totalorder %s53, %s67
      %p69 = scmp.eq.s32.totalorder %s22, 0
      %p70 = por %p68, %p69
      %s72 = sadd.s32 %s71, 1
      %p75 = scmp.eq.s32.totalorder %s16, 1
      %p76 = scmp.ne.s32.totalorder %s71, %s73
      %p77 = scmp.eq.s32.totalorder %s16, 0
      %p78 = por %p76, %p77
      %p79 = scmp.ne.s32.totalorder %s71, %s73
      %p80 = scmp.eq.s32.totalorder %s21, 1
      %p81 = por %p79, %p80
      %p82 = scmp.ne.s32.totalorder %s73, %s74
      %p83 = scmp.eq.s32.totalorder %s21, 0
      %p84 = por %p82, %p83
      %p85 = scmp.ne.s32.totalorder %s73, %s74
      %p86 = scmp.eq.s32.totalorder %s22, 1
      %p87 = por %p85, %p86
      %p89 = scmp.ne.s32.totalorder %s74, %s88
      %p90 = scmp.eq.s32.totalorder %s22, 0
      %p91 = por %p89, %p90
      %s93 = sadd.s32 %s92, 1
      %p96 = scmp.eq.s32.totalorder %s16, 1
      %p97 = scmp.ne.s32.totalorder %s92, %s94
      %p98 = scmp.eq.s32.totalorder %s16, 0
      %p99 = por %p97, %p98
      %p100 = scmp.ne.s32.totalorder %s92, %s94
      %p101 = scmp.eq.s32.totalorder %s21, 1
      %p102 = por %p100, %p101
      %p103 = scmp.ne.s32.totalorder %s94, %s95
      %p104 = scmp.eq.s32.totalorder %s21, 0
      %p105 = por %p103, %p104
      %p106 = scmp.ne.s32.totalorder %s94, %s95
      %p107 = scmp.eq.s32.totalorder %s22, 1
      %p108 = por %p106, %p107
      %p110 = scmp.ne.s32.totalorder %s95, %s109
      %p111 = scmp.eq.s32.totalorder %s22, 0
      %p112 = por %p110, %p111
      %s114 = sadd.s32 %s113, 1
      %p117 = scmp.eq.s32.totalorder %s16, 1
      %p118 = scmp.ne.s32.totalorder %s113, %s115
      %p119 = scmp.eq.s32.totalorder %s16, 0
      %p120 = por %p118, %p119
      %p121 = scmp.ne.s32.totalorder %s113, %s115
      %p122 = scmp.eq.s32.totalorder %s21, 1
      %p123 = por %p121, %p122
      %p124 = scmp.ne.s32.totalorder %s115, %s116
      %p125 = scmp.eq.s32.totalorder %s21, 0
      %p126 = por %p124, %p125
      %p127 = scmp.ne.s32.totalorder %s115, %s116
      %p128 = scmp.eq.s32.totalorder %s22, 1
      %p129 = por %p127, %p128
      %p131 = scmp.ne.s32.totalorder %s116, %s130
      %p132 = scmp.eq.s32.totalorder %s22, 0
      %p133 = por %p131, %p132
      %s135 = sadd.s32 %s134, 1
      %p138 = scmp.eq.s32.totalorder %s16, 1
      %p139 = scmp.ne.s32.totalorder %s134, %s136
      %p140 = scmp.eq.s32.totalorder %s16, 0
      %p141 = por %p139, %p140
      %p142 = scmp.ne.s32.totalorder %s134, %s136
      %p143 = scmp.eq.s32.totalorder %s21, 1
      %p144 = por %p142, %p143
      %p145 = scmp.ne.s32.totalorder %s136, %s137
      %p146 = scmp.eq.s32.totalorder %s21, 0
      %p147 = por %p145, %p146
      %p148 = scmp.ne.s32.totalorder %s136, %s137
      %p149 = scmp.eq.s32.totalorder %s22, 1
      %p150 = por %p148, %p149
      %p152 = scmp.ne.s32.totalorder %s137, %s151
      %p153 = scmp.eq.s32.totalorder %s22, 0
      %p154 = por %p152, %p153
      %s156 = sadd.s32 %s155, 1
      %p159 = scmp.eq.s32.totalorder %s16, 1
      %p160 = scmp.ne.s32.totalorder %s155, %s157
      %p161 = scmp.eq.s32.totalorder %s16, 0
      %p162 = por %p160, %p161
      %p163 = scmp.ne.s32.totalorder %s155, %s157
      %p164 = scmp.eq.s32.totalorder %s21, 1
      %p165 = por %p163, %p164
      %p166 = scmp.ne.s32.totalorder %s157, %s158
      %p167 = scmp.eq.s32.totalorder %s21, 0
      %p168 = por %p166, %p167
      %p169 = scmp.ne.s32.totalorder %s157, %s158
      %p170 = scmp.eq.s32.totalorder %s22, 1
      %p171 = por %p169, %p170
      %p173 = scmp.ne.s32.totalorder %s158, %s172
      %p174 = scmp.eq.s32.totalorder %s22, 0
      %p175 = por %p173, %p174
      %s176 = ssub.s32 %s16, %s23
      %p177 = scmp.eq.s32.totalorder %s176, 0
      %s179 = sadd.s32 %s178, 1
      %s180 = scalar_select %p177, %s178, %s179
      %p183 = pneg %p177
      %p184 = scmp.eq.s32.totalorder %s16, 1
      %p185 = por %p183, %p184
      %p186 = scmp.ne.s32.totalorder %s178, %s181
      %p187 = scmp.eq.s32.totalorder %s16, 0
      %p188 = por %p186, %p187
      %p189 = scmp.ne.s32.totalorder %s178, %s181
      %p190 = scmp.eq.s32.totalorder %s21, 1
      %p191 = por %p189, %p190
      %p192 = scmp.ne.s32.totalorder %s181, %s182
      %p193 = scmp.eq.s32.totalorder %s21, 0
      %p194 = por %p192, %p193
      %p195 = scmp.ne.s32.totalorder %s181, %s182
      %p196 = scmp.eq.s32.totalorder %s22, 1
      %p197 = por %p195, %p196
      %p199 = scmp.ne.s32.totalorder %s182, %s198
      %p200 = scmp.eq.s32.totalorder %s22, 0
      %p201 = por %p199, %p200
      %p202 = scmp.le.s32.totalorder 1, %s16
      %p203 = scmp.lt.s32.totalorder %s16, 3
      %p204 = pnand %p202, %p203
      %p205 = pneg %p204
      // Predicated region
      $region9: #{tpu_custom_call.1} parent=5 // pred_check
        _
      $region10: #{tpu_custom_call.1} parent=5 // pred_check_branch
        %207 = sbr.rel (%p204) target = $region12
      $region11: #{tpu_custom_call.1} parent=5 // pred_region
        %s208 = ssub.s32 %s16, 1
        // Predicated region
        $region13: #{tpu_custom_call.1} parent=11 // pred_check
          %p209 = pneg %p63
        $region14: #{tpu_custom_call.1} parent=11 // pred_check_branch
          %211 = sbr.rel (%p209) target = $region16
        $region15: #{tpu_custom_call.1} parent=11 // pred_region
          _
        $region16: #{tpu_custom_call.1} parent=11 // pred_fallthru
          _
        // Predicated region
        $region17: #{tpu_custom_call.1} parent=11 // pred_check
          %p212 = pneg %p84
        $region18: #{tpu_custom_call.1} parent=11 // pred_check_branch
          %214 = sbr.rel (%p212) target = $region20
        $region19: #{tpu_custom_call.1} parent=11 // pred_region
          _
        $region20: #{tpu_custom_call.1} parent=11 // pred_fallthru
          _
        // Predicated region
        $region21: #{tpu_custom_call.1} parent=11 // pred_check
          %p215 = pneg %p105
        $region22: #{tpu_custom_call.1} parent=11 // pred_check_branch
          %217 = sbr.rel (%p215) target = $region24
        $region23: #{tpu_custom_call.1} parent=11 // pred_region
          _
        $region24: #{tpu_custom_call.1} parent=11 // pred_fallthru
          _
        // Predicated region
        $region25: #{tpu_custom_call.1} parent=11 // pred_check
          %p218 = pneg %p126
        $region26: #{tpu_custom_call.1} parent=11 // pred_check_branch
          %220 = sbr.rel (%p218) target = $region28
        $region27: #{tpu_custom_call.1} parent=11 // pred_region
          _
        $region28: #{tpu_custom_call.1} parent=11 // pred_fallthru
          _
        // Predicated region
        $region29: #{tpu_custom_call.1} parent=11 // pred_check
          %p221 = pneg %p147
        $region30: #{tpu_custom_call.1} parent=11 // pred_check_branch
          %223 = sbr.rel (%p221) target = $region32
        $region31: #{tpu_custom_call.1} parent=11 // pred_region
          _
        $region32: #{tpu_custom_call.1} parent=11 // pred_fallthru
          _
        // Predicated region
        $region33: #{tpu_custom_call.1} parent=11 // pred_check
          %p224 = pneg %p168
        $region34: #{tpu_custom_call.1} parent=11 // pred_check_branch
          %226 = sbr.rel (%p224) target = $region36
        $region35: #{tpu_custom_call.1} parent=11 // pred_region
          _
        $region36: #{tpu_custom_call.1} parent=11 // pred_fallthru
          _
      $region12: #{tpu_custom_call.1} parent=5 // pred_fallthru
        _
      %p227 = scmp.lt.s32.totalorder %s16, 2
      // Predicated region
      $region37: #{tpu_custom_call.1} parent=5 // pred_check
        %p228 = pneg %p227
      $region38: #{tpu_custom_call.1} parent=5 // pred_check_branch
        %230 = sbr.rel (%p228) target = $region40
      $region39: #{tpu_custom_call.1} parent=5 // pred_region
        // Predicated region
        $region41: #{tpu_custom_call.1} parent=39 // pred_check
          %p231 = pneg %p36
        $region42: #{tpu_custom_call.1} parent=39 // pred_check_branch
          %233 = sbr.rel (%p231) target = $region44
        $region43: #{tpu_custom_call.1} parent=39 // pred_region
          %p234 = scmp.lt.s32.totalorder %s16, 1
          %s235 = scalar_select %p234, %s16, 1
          %s236 = smul.addr %s235, 8
          %s237 = scalar_lea.vmem %s0, %s236
        $region44: #{tpu_custom_call.1} parent=39 // pred_fallthru
          _
      $region40: #{tpu_custom_call.1} parent=5 // pred_fallthru
        _
      %p238 = scmp.le.s32.totalorder 1, %s16
      %p239 = scmp.lt.s32.totalorder %s16, 3
      %p240 = pnand %p238, %p239
      %p241 = pneg %p240
      // Predicated region
      $region45: #{tpu_custom_call.1} parent=5 // pred_check
        _
      $region46: #{tpu_custom_call.1} parent=5 // pred_check_branch
        %243 = sbr.rel (%p240) target = $region48
      $region47: #{tpu_custom_call.1} parent=5 // pred_region
        %s244 = ssub.s32 %s16, 1
        %p245 = scmp.lt.s32.totalorder %s21, 1
        %s246 = scalar_select %p245, %s21, 1
        %s247 = smul.addr %s246, 8
        %s248 = scalar_lea.vmem %s0, %s247
        %p249 = pneg %p42
        %p250 = pneg %p39
        %p251 = pneg %p63
        %p252 = pneg %p60
        %p253 = pneg %p84
        %p254 = pneg %p81
        %p255 = pneg %p105
        %p256 = pneg %p102
        %p257 = pneg %p126
        %p258 = pneg %p123
        %p259 = pneg %p147
        %p260 = pneg %p144
        %p261 = pneg %p168
        %p262 = pneg %p165
        %p263 = pneg %p194
        %p264 = pneg %p191
        %s265 = sand.u32 %s181, 1
        %s266 = scalar_lea.sflag [#allocation3], %s265
        %s267 = sand.u32 %s181, 1
        %s268 = smul.addr %s267, 8
        %s269 = scalar_lea.vmem [#allocation2], %s268
        %p270 = scmp.lt.s32.totalorder %s21, 1
        %s271 = scalar_select %p270, %s21, 1
        %s272 = smul.addr %s271, 8
        %s273 = scalar_lea.vmem %s0, %s272
        %v274 = vld [vmem:[%s273] sm:$0xff]
        %v275 = vld [vmem:[%s1] sm:$0xff]
        %v276 = vld [vmem:[%s1 + $0x8] sm:$0xff]
        %v277 = vld [vmem:[%s1 + $0x10] sm:$0xff]
        %v278 = vld [vmem:[%s1 + $0x18] sm:$0xff]
        %v279 = vld [vmem:[%s2] sm:$0x1]
        %v281 = vperm.slane %v279, 0
        %vm283 = vcmask 261120
        %v285 = vsel %vm283, %v274, 0
        %287 = vmatpush.msra.mxu0 0.0
        %288 = vmatpush.msra.mxu0 0.0
        %289 = vmatpush.msra.mxu0 0.0
        %290 = vmatpush.msra.mxu0 0.0
        %291 = vmatpush.msra.mxu0 0.0
        %292 = vmatpush.msra.mxu0 0.0
        %293 = vmatpush.msra.mxu0 0.0
        %294 = vmatpush.msra.mxu0 0.0
        %295 = vmatpush.msra.mxu0 0.0
        %296 = vmatpush.msra.mxu0 0.0
        %297 = vmatpush.msra.mxu0 0.0
        %298 = vmatpush.msra.mxu0 0.0
        %299 = vmatpush.msra.mxu0 %v278
        %300 = vmatpush.msra.mxu0 %v277
        %301 = vmatpush.msra.mxu0 %v276
        %302 = vmatpush.msra.mxu0 %v275
        %303 = vmatmul.f32.gmra.mxu0 %v285
        %v304 = vpop.f32.mrf.mxu0
        %v305 = vadd.f32 %v281, %v304
        %306 = vdwg.mxu0
        %v307 = vmax.f32 %v305, 0.0
        %v308 = vld [vmem:[%s3] sm:$0xff]
        %v309 = vld [vmem:[%s3 + $0x8] sm:$0xff]
        %v310 = vld [vmem:[%s3 + $0x10] sm:$0xff]
        %v311 = vld [vmem:[%s3 + $0x18] sm:$0xff]
        %v312 = vld [vmem:[%s3 + $0x20] sm:$0xff]
        %v313 = vld [vmem:[%s3 + $0x28] sm:$0xff]
        %v314 = vld [vmem:[%s3 + $0x30] sm:$0xff]
        %v315 = vld [vmem:[%s3 + $0x38] sm:$0xff]
        %v316 = vld [vmem:[%s4] sm:$0x1]
        %v318 = vperm.slane %v316, 0
        %vm320 = vcmask 523264
        %v322 = vsel %vm320, %v307, 0
        %324 = vmatpush.msra.mxu0 0.0
        %325 = vmatpush.msra.mxu0 0.0
        %326 = vmatpush.msra.mxu0 0.0
        %327 = vmatpush.msra.mxu0 0.0
        %328 = vmatpush.msra.mxu0 0.0
        %329 = vmatpush.msra.mxu0 0.0
        %330 = vmatpush.msra.mxu0 0.0
        %331 = vmatpush.msra.mxu0 0.0
        %332 = vmatpush.msra.mxu0 %v315
        %333 = vmatpush.msra.mxu0 %v314
        %334 = vmatpush.msra.mxu0 %v313
        %335 = vmatpush.msra.mxu0 %v312
        %336 = vmatpush.msra.mxu0 %v311
        %337 = vmatpush.msra.mxu0 %v310
        %338 = vmatpush.msra.mxu0 %v309
        %339 = vmatpush.msra.mxu0 %v308
        %340 = vmatmul.f32.gmra.mxu0 %v322
        %v341 = vpop.f32.mrf.mxu0
        %v342 = vadd.f32 %v318, %v341
        %343 = vdwg.mxu0
        %v344 = vadd.f32 %v342, %v274
        %v345 = vsel %vm283, %v344, 0.0
        %346 = vadd.xlane.f32.xlu0 %v345
        %v347 = vpop.xlane.xlu0 %346
        %v348 = vrcp.pop 32.0
        %v349 = vmul.f32 32.0, %v348
        %v350 = vsub.f32 1.0, %v349
        %v351 = vmul.f32 %v348, %v350
        %v352 = vadd.f32 %v348, %v351
        %vm353 = vweird.f32 %v348
        %v354 = vsel %vm353, %v348, %v352
        %v355 = vmul.f32 %v347, %v354
        %v356 = vsub.f32 %v344, %v355
        %v357 = vmul.f32 %v356, %v356
        %v358 = vsel %vm283, %v357, 0.0
        %359 = vadd.xlane.f32.xlu0 %v358
        %v360 = vpop.xlane.xlu0 %359
        %v361 = vmul.f32 %v360, 0.032258064
        %v362 = vrsqrt.pop %v361
        %v363 = vmul.f32 %v362, %v361
        %v364 = vmul.f32 %v363, %v362
        %v365 = vmul.f32 0.5, %v364
        %v366 = vsub.f32 1.5, %v365
        %v367 = vmul.f32 %v362, %v366
        %v368 = vmul.f32 %v361, %v367
        %vm369 = vcmp.eq.f32.partialorder %v361, inf
        %v370 = vsel %vm369, %v361, %v368
        %vm371 = vcmp.eq.f32.partialorder %v361, 0.0
        %v372 = vand.u32 %v361, 2147483648
        %v373 = vsel %vm371, %v372, %v370
        %v374 = vadd.f32 %v373, 0.001
        %v375 = vrcp.pop %v374
        %v376 = vmul.f32 %v374, %v375
        %v377 = vsub.f32 1.0, %v376
        %v378 = vmul.f32 %v375, %v377
        %v379 = vadd.f32 %v375, %v378
        %vm380 = vweird.f32 %v374
        %vm381 = vweird.f32 %v375
        %vm382 = vmor %vm380, %vm381
        %v383 = vsel %vm382, %v375, %v379
        %v384 = vand.u32 2147483647, %v374
        %vm385 = vcmp.eq.f32.partialorder %v384, 8.507059e+37
        %v386 = vand.u32 %v374, 2147483648
        %v387 = vor.u32 1.1754944e-38, %v386
        %v388 = vsel %vm385, %v387, %v383
        %v389 = vmul.f32 %v356, %v388
        %v390 = vld [vmem:[%s5] sm:$0x1]
        %v392 = vperm.slane %v390, 0
        %v394 = vmul.f32 %v389, %v392
        %v395 = vld [vmem:[%s6] sm:$0x1]
        %v397 = vperm.slane %v395, 0
        %v399 = vadd.f32 %v394, %v397
        %400 = vst.msk [vmem:[%s269] sm:$0xff] %vm283, %v399
        %s401 = sand.u32 %s181, 1
        %s402 = scalar_lea.sflag [#allocation3], %s401
        %s403 = sand.u32 %s181, 1
        %s404 = smul.addr %s403, 8
        %s405 = scalar_lea.vmem [#allocation2], %s404
        // Predicated region
        $region49: #{tpu_custom_call.1} parent=47 // pred_check
          %p406 = pneg %p191
        $region50: #{tpu_custom_call.1} parent=47 // pred_check_branch
          %408 = sbr.rel (%p406) target = $region52
        $region51: #{tpu_custom_call.1} parent=47 // pred_region
          %410 = vsyncadd %s402, 0
          %s411 = smul.addr %s21, 8
          %s412 = scalar_lea.hbm %s7, %s411
          %s414 = sshll.u32 %s405, 4
          %s415 = int_to_ptr.vmem [resolvable:$true] %s414
          %s416 = sshll.u32 %s412, 4
          %s417 = int_to_ptr.hbm [resolvable:$true] %s416
          %419 = dma.vmem_to_hbm [thread:$0]  %s415, 128, %s417, %s402
        $region52: #{tpu_custom_call.1} parent=47 // pred_fallthru
          _
      $region48: #{tpu_custom_call.1} parent=5 // pred_fallthru
        _
      %p420 = scmp.le.s32.totalorder 2, %s16
      // Predicated region
      $region53: #{tpu_custom_call.1} parent=5 // pred_check
        %p421 = pneg %p420
      $region54: #{tpu_custom_call.1} parent=5 // pred_check_branch
        %423 = sbr.rel (%p421) target = $region56
      $region55: #{tpu_custom_call.1} parent=5 // pred_region
        %s424 = ssub.s32 %s16, 2
        // Predicated region
        $region57: #{tpu_custom_call.1} parent=55 // pred_check
          %p425 = pneg %p197
        $region58: #{tpu_custom_call.1} parent=55 // pred_check_branch
          %427 = sbr.rel (%p425) target = $region60
        $region59: #{tpu_custom_call.1} parent=55 // pred_region
          %s428 = sand.u32 %s182, 1
          %s429 = scalar_lea.sflag [#allocation3], %s428
          %s430 = sand.u32 %s182, 1
          %s431 = smul.addr %s430, 8
          %s432 = scalar_lea.vmem [#allocation2], %s431
          %434 = dma.done %s429, 128
        $region60: #{tpu_custom_call.1} parent=55 // pred_fallthru
          _
      $region56: #{tpu_custom_call.1} parent=5 // pred_fallthru
        _
    $region6: #{tpu_custom_call.1} parent=1 // loop_footer
      %s20 = sadd.s32 1, %s16
    $region7: #{tpu_custom_call.1} parent=1 // loop_footer_branch
      %15 = sbr.rel target = $region3
    $region8: #{tpu_custom_call.1} parent=1 // loop_exit
      _
    %435 = vsyncpa [#allocation3], 1
    %s436 = scalar_lea.sflag [#allocation3], 1
    %437 = vsyncpa %s436, 1

</llo_original>
